<compile_context>
chip_gen: v7x
topology: tpu7x:2x2x1
jax: 0.10.0
libtpu: 0.0.40
codegen_flags: <defaults>
</compile_context>

<pallas_src>
import functools

import numpy as np
import jax
import jax.numpy as jnp
from jax.experimental import pallas as pl
from jax.experimental.pallas import tpu as pltpu

_STRIDES = (1, 2, 1, 2, 1, 2)
_CELLS = 32
_IMG = 64
_BN_EPS = 1e-5


# -----------------------------------------------------------------------------
# Conv kernel: 3x3 conv (BN folded, ReLU fused) as ONE im2col matmul.
# -----------------------------------------------------------------------------
def _conv_im2col_kernel(x_ref, w_ref, b_ref, o_ref, *, plane_ids, offsets,
                        m_rows):
    """x_ref: (1, P, R_in, C) bf16 flat activation (P=1) / parity planes (P=4)
       w_ref: (9*C, Cout)     bf16 folded weights, row index = tap*C + cin
       b_ref: (1, Cout)       f32  folded bias
       o_ref: (1, m_rows, Cout) bf16 output."""
    pieces = []
    for k in range(9):
        p, off = plane_ids[k], offsets[k]
        pieces.append(x_ref[0, p, off:off + m_rows, :])   # (m_rows, C) bf16
    lhs = jnp.concatenate(pieces, axis=-1)                # (m_rows, 9*C) bf16
    acc = jnp.dot(lhs, w_ref[...], preferred_element_type=jnp.float32)
    o_ref[0, :, :] = jnp.maximum(acc + b_ref[...], 0.0).astype(o_ref.dtype)


def _conv_layer(x_planes, w288, bias, *, m_rows, plane_ids, offsets):
    """x_planes: (B, P, R_in, C) bf16 -> (B, m_rows, Cout) bf16."""
    B, P, R_in, C = x_planes.shape
    cout = w288.shape[-1]
    kern = functools.partial(_conv_im2col_kernel, plane_ids=plane_ids,
                             offsets=offsets, m_rows=m_rows)
    return pl.pallas_call(
        kern,
        out_shape=jax.ShapeDtypeStruct((B, m_rows, cout), jnp.bfloat16),
        grid_spec=pltpu.PrefetchScalarGridSpec(
            num_scalar_prefetch=0,
            grid=(B,),
            in_specs=[
                pl.BlockSpec((1, P, R_in, C), lambda b: (b, 0, 0, 0)),
                pl.BlockSpec((9 * C, cout), lambda b: (0, 0)),
                pl.BlockSpec((1, cout), lambda b: (0, 0)),
            ],
            out_specs=pl.BlockSpec((1, m_rows, cout), lambda b: (b, 0, 0)),
        ),
        compiler_params=pltpu.CompilerParams(
            dimension_semantics=("parallel",),
            vmem_limit_bytes=32 * 1024 * 1024),
    )(x_planes, w288, bias)


# -----------------------------------------------------------------------------
# fc1 + tanh kernel
# -----------------------------------------------------------------------------
def _fc_tanh_kernel(x_ref, w_ref, b_ref, o_ref):
    y = jnp.dot(x_ref[...], w_ref[...], preferred_element_type=jnp.float32)
    o_ref[...] = jnp.tanh(y + b_ref[...])


def fc_tanh(x, w, b):
    """x: (M, K), w: (K, N), b: (N,) f32 -> tanh(x @ w + b) f32."""
    M, K = x.shape
    _, N = w.shape
    return pl.pallas_call(
        _fc_tanh_kernel,
        out_shape=jax.ShapeDtypeStruct((M, N), jnp.float32),
        grid_spec=pltpu.PrefetchScalarGridSpec(
            num_scalar_prefetch=0,
            grid=(1,),
            in_specs=[
                pl.BlockSpec((M, K), lambda i: (0, 0)),
                pl.BlockSpec((K, N), lambda i: (0, 0)),
                pl.BlockSpec((1, N), lambda i: (0, 0)),
            ],
            out_specs=pl.BlockSpec((M, N), lambda i: (0, 0)),
        ),
        compiler_params=pltpu.CompilerParams(
            dimension_semantics=("arbitrary",)),
    )(x, w, b.reshape(1, N))


# -----------------------------------------------------------------------------
# Wrapper-side parity decomposition for stride-2 layers (1x activation size;
# every in-kernel read becomes a unit-stride row slice).
# -----------------------------------------------------------------------------
def _make_planes(act_flat, hs, ws, hp, wq):
    B, _, C = act_flat.shape
    y = act_flat.reshape(B, hs, ws, C)
    planes = []
    for p in range(2):
        for q in range(2):
            yp = y[:, p::2, q::2, :][:, :hp, :wq, :]
            pad_h = hp - yp.shape[1]
            pad_w = wq - yp.shape[2]
            if pad_h or pad_w:
                yp = jnp.pad(yp, ((0, 0), (0, pad_h), (0, pad_w), (0, 0)))
            planes.append(yp.reshape(B, hp * wq, C))
    return jnp.stack(planes, axis=1)                      # (B, 4, hp*wq, C)


# -----------------------------------------------------------------------------
# Sender module (parameters built deterministically in-script).
# -----------------------------------------------------------------------------
class SenderPallas:
    def __init__(self, n_features, n_hidden, images, key):
        self.images = images
        self.n_hidden = n_hidden
        raw = {}

        if images:
            convs, layers = [], []
            hs, ws, wv = _IMG, _IMG, _IMG     # storage H, storage W, valid W
            cin_raw = 3
            n_layers = len(_STRIDES)
            for idx, s in enumerate(_STRIDES):
                key, kw_, kb_, kg_, kbt_, km_, kv_ = jax.random.split(key, 7)
                w = 0.05 * jax.random.normal(kw_, (_CELLS, cin_raw, 3, 3), jnp.float32)
                b = 0.05 * jax.random.normal(kb_, (_CELLS,), jnp.float32)
                gamma = 0.5 + jax.random.uniform(kg_, (_CELLS,), jnp.float32)
                beta = 0.05 * jax.random.normal(kbt_, (_CELLS,), jnp.float32)
                mean = 0.05 * jax.random.normal(km_, (_CELLS,), jnp.float32)
                var = 0.5 + jax.random.uniform(kv_, (_CELLS,), jnp.float32)
                convs.append((w, b, gamma, beta, mean, var))

                # Fold eval-mode BN into the conv weights/bias (done once).
                scale = gamma / jnp.sqrt(var + _BN_EPS)
                wf = w * scale[:, None, None, None]               # (O, I, 3, 3)
                bf = ((b - mean) * scale + beta).reshape(1, _CELLS)
                wmat = jnp.transpose(wf, (2, 3, 1, 0))            # (3, 3, I, O)
                if cin_raw < _CELLS:                              # layer 0: Cin->32
                    wmat = jnp.pad(wmat, ((0, 0), (0, 0),
                                          (0, _CELLS - cin_raw), (0, 0)))
                # im2col RHS: row index = tap*32 + cin, tap k = 3*di + dj.
                w288 = wmat.reshape(9 * _CELLS, _CELLS).astype(jnp.bfloat16)

                # Static layer geometry.
                if s == 1:
                    hov, wov = hs - 2, wv - 2
                    out_ws = ws
                    pcount, r_in = 1, hs * ws + 2     # +2 finite pad rows supplied
                    offsets = tuple(di * ws + dj
                                    for di in range(3) for dj in range(3))
                    plane_ids = (0,) * 9
                    prep = None
                    m_rows = hov * out_ws
                else:
                    hov = (hs - 3) // 2 + 1
                    wov = (wv - 3) // 2 + 1
                    wq, hp = wov + 1, hov + 2
                    out_ws = wq
                    pcount, r_in = 4, hp * wq
                    offsets = tuple((di // 2) * wq + (dj // 2)
                                    for di in range(3) for dj in range(3))
                    plane_ids = tuple((di % 2) * 2 + (dj % 2)
                                      for di in range(3) for dj in range(3))
                    prep = (hs, ws, hp, wq)
                    # Emit 2 extra (finite, in-bounds) rows so the next stride-1
                    # layer's shifted reads never leave its input block.
                    m_rows = hov * out_ws + (0 if idx == n_layers - 1 else 2)
                assert max(offsets) + m_rows <= r_in     # every read in-bounds
                layers.append(dict(stride=s, pcount=pcount, r_in=r_in,
                                   m_rows=m_rows, offsets=offsets,
                                   plane_ids=plane_ids, prep=prep,
                                   w288=w288, bias=bf))
                hs, ws, wv = hov, out_ws, wov
                cin_raw = _CELLS

            raw["conv"] = convs
            self.layers = layers
            self._final_hw = (hs, ws, wv)               # (5, 6, 5)
            fc_in = hs * wv * _CELLS                    # 800 = 5*5*32
        else:
            fc_in = n_features

        key, kw_, kb_ = jax.random.split(key, 3)
        bound = 1.0 / float(np.sqrt(fc_in))
        fc_w = jax.random.uniform(kw_, (n_hidden, fc_in), jnp.float32, -bound, bound)
        fc_b = jax.random.uniform(kb_, (n_hidden,), jnp.float32, -bound, bound)
        raw["fc1_w"], raw["fc1_b"] = fc_w, fc_b
        self.raw = raw

        if images:
            # Expand fc1 to consume the kernel's (5, 6, 32) storage flatten
            # directly: zero columns for garbage storage positions (kept finite
            # by construction) and a permutation matching PyTorch's
            # channel-major x.reshape(batch, -1).
            hs, ws, wv = self._final_hw
            n_store = hs * ws * _CELLS
            perm = np.zeros((n_store,), dtype=np.int32)
            valid = np.zeros((n_store,), dtype=bool)
            for r in range(hs * ws):
                i, j = divmod(r, ws)
                if j < wv:
                    for c in range(_CELLS):
                        perm[r * _CELLS + c] = c * (hs * wv) + i * wv + j
                        valid[r * _CELLS + c] = True
            w_exp = fc_w.T[jnp.asarray(perm), :]                 # (n_store, H)
            w_exp = jnp.where(jnp.asarray(valid)[:, None], w_exp, 0.0)
            self.fc_w = w_exp.astype(jnp.bfloat16)               # bf16 operand
        else:
            self.fc_w = fc_w.T                                   # (F, H) f32
        self.fc_b = fc_b.astype(jnp.float32)

        self._forward = jax.jit(self._forward_impl)

    def _forward_impl(self, x):
        if self.images:
            batch = x.shape[0]
            x = x.reshape((-1, 3, _IMG, _IMG))                   # NCHW as in torch
            x = jnp.transpose(x, (0, 2, 3, 1))                   # -> NHWC
            act = x.reshape(x.shape[0], _IMG * _IMG, 3)
            # One pad: +2 zero rows (layer-0 in-bounds reads) and Cin 3 -> 32;
            # store bf16 (matmul operand / HBM traffic dtype).
            act = jnp.pad(act, ((0, 0), (0, 2),
                                (0, _CELLS - 3))).astype(jnp.bfloat16)
            for lyr in self.layers:
                if lyr["stride"] == 2:
                    xin = _make_planes(act, *lyr["prep"])
                else:
                    xin = act.reshape(act.shape[0], 1, lyr["r_in"], _CELLS)
                act = _conv_layer(xin, lyr["w288"], lyr["bias"],
                                  m_rows=lyr["m_rows"],
                                  plane_ids=lyr["plane_ids"],
                                  offsets=lyr["offsets"])
            x = act.reshape(batch, -1)                           # (B, 960) bf16
        return fc_tanh(x, self.fc_w, self.fc_b)

    def __call__(self, x):
        return self._forward(x)


# -----------------------------------------------------------------------------
# Pure-JAX f32 reference (correctness check only)
# -----------------------------------------------------------------------------
def _ref_forward(sender, x):
    raw = sender.raw
    if sender.images:
        batch = x.shape[0]
        x = x.reshape((-1, 3, _IMG, _IMG))
        for (w, b, g, bt, mu, var), s in zip(raw["conv"], _STRIDES):
            y = jax.lax.conv_general_dilated(
                x, w, (s, s), "VALID",
                dimension_numbers=("NCHW", "OIHW", "NCHW"))
            y = y + b[None, :, None, None]
            y = (y - mu[None, :, None, None]) / jnp.sqrt(
                var[None, :, None, None] + _BN_EPS) * g[None, :, None, None] \
                + bt[None, :, None, None]
            x = jnp.maximum(y, 0.0)
        x = x.reshape((batch, -1))
    return jnp.tanh(x @ raw["fc1_w"].T + raw["fc1_b"])


if __name__ == "__main__":
    root = jax.random.PRNGKey(0)
    k_params_vec, k_params_img, k_xvec, k_ximg = jax.random.split(root, 4)

    # --- images=False branch: fc1 + tanh ---
    n_features, n_hidden, batch = 16, 32, 4
    sender_vec = SenderPallas(n_features, n_hidden, images=False, key=k_params_vec)
    x_vec = jax.random.normal(k_xvec, (batch, n_features), jnp.float32)
    y_vec = jax.block_until_ready(sender_vec(x_vec))
    assert y_vec.shape == (batch, n_hidden)
    ref_vec = _ref_forward(sender_vec, x_vec)
    assert jnp.allclose(y_vec, ref_vec, rtol=1e-2, atol=1e-2), "vector branch mismatch"

    # --- images=True branch: 6x(conv+BN+ReLU) -> flatten -> fc1 + tanh ---
    img_batch = 2
    sender_img = SenderPallas(n_features, n_hidden, images=True, key=k_params_img)
    x_img = jax.random.normal(k_ximg, (img_batch, 3, _IMG, _IMG), jnp.float32)
    y_img = jax.block_until_ready(sender_img(x_img))
    assert y_img.shape == (img_batch, n_hidden)
    ref_img = _ref_forward(sender_img, x_img)
    # bf16 activation storage + bf16 MXU operands vs f32 reference.
    assert jnp.allclose(y_img, ref_img, rtol=4e-2, atol=4e-2), "image branch mismatch"

    print("KERNEL_OK")
</pallas_src>

<mosaic_0001>
module attributes {stable_mosaic.version = 11 : i64} {
  func.func @_fc_tanh_kernel(%arg0: i32, %arg1: memref<4x16xf32, #tpu.memory_space<vmem>>, %arg2: memref<16x32xf32, #tpu.memory_space<vmem>>, %arg3: memref<1x32xf32, #tpu.memory_space<vmem>>, %arg4: memref<4x32xf32, #tpu.memory_space<vmem>>) attributes {dimension_semantics = [#tpu.dimension_semantics<arbitrary>], iteration_bounds = array<i64: 1>, scalar_prefetch = 0 : i64, scratch_operands = 0 : i64, tpu.core_type = #tpu.core_type<tc>, window_params = [{pipeline_mode = #tpu.pipeline_mode<synchronous>, transform_indices = @transform_0, window_bounds = array<i64: 4, 16>}, {pipeline_mode = #tpu.pipeline_mode<synchronous>, transform_indices = @transform_1, window_bounds = array<i64: 16, 32>}, {pipeline_mode = #tpu.pipeline_mode<synchronous>, transform_indices = @transform_2, window_bounds = array<i64: 1, 32>}, {pipeline_mode = #tpu.pipeline_mode<synchronous>, transform_indices = @transform_3, window_bounds = array<i64: 4, 32>}]} {
    %c0 = arith.constant 0 : index
    %c0_0 = arith.constant 0 : index
    %0 = vector.load %arg1[%c0, %c0_0] : memref<4x16xf32, #tpu.memory_space<vmem>>, vector<4x16xf32>
    %c0_1 = arith.constant 0 : index
    %c0_2 = arith.constant 0 : index
    %1 = vector.load %arg2[%c0_1, %c0_2] : memref<16x32xf32, #tpu.memory_space<vmem>>, vector<16x32xf32>
    %cst = arith.constant dense<0.000000e+00> : vector<4x32xf32>
    %2 = tpu.matmul %0, %1, %cst {dimension_numbers = #tpu.dot_dimension_numbers<[1], [0], [0], [1], [0, 0, 1, 1], [], []>} : vector<4x16xf32>, vector<16x32xf32>, vector<4x32xf32> -> vector<4x32xf32>
    %c0_3 = arith.constant 0 : index
    %c0_4 = arith.constant 0 : index
    %3 = vector.load %arg3[%c0_3, %c0_4] : memref<1x32xf32, #tpu.memory_space<vmem>>, vector<1x32xf32>
    %4 = vector.broadcast %3 : vector<1x32xf32> to vector<4x32xf32>
    %5 = arith.addf %2, %4 : vector<4x32xf32>
    %6 = math.tanh %5 : vector<4x32xf32>
    %c0_5 = arith.constant 0 : index
    %c0_6 = arith.constant 0 : index
    %7 = vector.load %arg4[%c0_5, %c0_6] : memref<4x32xf32, #tpu.memory_space<vmem>>, vector<4x32xf32>
    tpu.vector_store %arg4[%c0_5, %c0_6], %6 {strides = array<i32>} : memref<4x32xf32, #tpu.memory_space<vmem>>, vector<4x32xf32>,
    return
  }
  func.func @transform_0(%arg0: i32) -> (i32, i32) {
    %c0_i32 = arith.constant 0 : i32
    %c0_i32_0 = arith.constant 0 : i32
    %c0_i32_1 = arith.constant 0 : i32
    return %c0_i32, %c0_i32_0 : i32, i32
  }
  func.func @transform_1(%arg0: i32) -> (i32, i32) {
    %c0_i32 = arith.constant 0 : i32
    %c0_i32_0 = arith.constant 0 : i32
    %c0_i32_1 = arith.constant 0 : i32
    return %c0_i32, %c0_i32_0 : i32, i32
  }
  func.func @transform_2(%arg0: i32) -> (i32, i32) {
    %c0_i32 = arith.constant 0 : i32
    %c0_i32_0 = arith.constant 0 : i32
    %c0_i32_1 = arith.constant 0 : i32
    return %c0_i32, %c0_i32_0 : i32, i32
  }
  func.func @transform_3(%arg0: i32) -> (i32, i32) {
    %c0_i32 = arith.constant 0 : i32
    %c0_i32_0 = arith.constant 0 : i32
    %c0_i32_1 = arith.constant 0 : i32
    return %c0_i32, %c0_i32_0 : i32, i32
  }
}

</mosaic_0001>

<llo_original>
// kernel: _forward_impl.1
$region0: #{_forward_impl.1}
  #allocation0 [shape = 'u32[]', space=smem, size = 0x4, offset = 0x4, fixed_abs, tag = 'smem constant byte address 0x4 - core index']
  #allocation1 [shape = 'u32[144,128]{1,0:T(1,128)}', space=vmem, size = 0x12000, scoped, tag = 'internal scratch']
  %s0 = inlined_call_operand.hbm [shape: f32[4,16], index: 0, kind: input, shape index: {}]
  %s1 = inlined_call_operand.hbm [shape: f32[16,32], index: 1, kind: input, shape index: {}]
  %s2 = inlined_call_operand.vmem [shape: f32[1,32], index: 2, kind: input, shape index: {}]
  %s3 = inlined_call_operand.hbm [shape: f32[4,32], index: 3, kind: output, shape index: {}]
  %s4 = sld [smem:[#allocation0]]
  $region30: #{_forward_impl.1} parent=0
    _
  %s6 = ssub.s32 1, %s4
  %s7 = scalar_select 0, %s6, %s4
  $region1: #{_forward_impl.1} parent=0
    #allocation2 [shape = 'u8[2048]{0}', space=vmem, size = 0x800, scoped, tag = 'input window, operand 0, single buffered']
    #allocation3 [shape = 's32[1]{0}', space=sflag, size = 0x4, scoped, tag = 'scoped memory for _forward_impl.1']
    #allocation4 [shape = 's32[1]{0}', space=sflag, size = 0x4, scoped, tag = 'scoped memory for _forward_impl.1']
    #allocation5 [shape = 'u8[8192]{0}', space=vmem, size = 0x2000, scoped, tag = 'input window, operand 1, single buffered']
    #allocation6 [shape = 's32[1]{0}', space=sflag, size = 0x4, scoped, tag = 'scoped memory for _forward_impl.1']
    #allocation7 [shape = 'u8[2048]{0}', space=vmem, size = 0x800, scoped, tag = 'output window, operand 0, single buffered']
    %8 = vsyncpa [#allocation3], 0
    %9 = vsyncpa [#allocation6], 0
    %10 = vsyncpa [#allocation4], 0
    // Predicated region
    $region2: #{_forward_impl.1} parent=1 // pred_check
      _
    $region3: #{_forward_impl.1} parent=1 // pred_check_branch
      %12 = sbr.rel (0) target = $region5
    $region4: #{_forward_impl.1} parent=1 // pred_region
      %s14 = ssub.s32 64, 64
      %15 = vsyncadd [#allocation3], %s14
      %s17 = sshll.u32 [#allocation2], 4
      %s18 = int_to_ptr.vmem [resolvable:$true] %s17
      %20 = dma.hbm_to_vmem [thread:$0]  %s0, 64, %s18, [#allocation3]
    $region5: #{_forward_impl.1} parent=1 // pred_fallthru
      _
    // Predicated region
    $region6: #{_forward_impl.1} parent=1 // pred_check
      _
    $region7: #{_forward_impl.1} parent=1 // pred_check_branch
      %22 = sbr.rel (0) target = $region9
    $region8: #{_forward_impl.1} parent=1 // pred_region
      %s24 = ssub.s32 256, 256
      %25 = vsyncadd [#allocation6], %s24
      %s26 = sshll.u32 [#allocation5], 4
      %s27 = int_to_ptr.vmem [resolvable:$true] %s26
      %32 = dma.hbm_to_vmem [thread:$0]  %s1, 256, %s27, [#allocation6], 128, 128, 8
    $region9: #{_forward_impl.1} parent=1 // pred_fallthru
      _
    // Predicated region
    $region10: #{_forward_impl.1} parent=1 // pred_check
      _
    $region11: #{_forward_impl.1} parent=1 // pred_check_branch
      %34 = sbr.rel (0) target = $region13
    $region12: #{_forward_impl.1} parent=1 // pred_region
      _
    $region13: #{_forward_impl.1} parent=1 // pred_fallthru
      _
    // Predicated region
    $region14: #{_forward_impl.1} parent=1 // pred_check
      _
    $region15: #{_forward_impl.1} parent=1 // pred_check_branch
      %36 = sbr.rel (0) target = $region17
    $region16: #{_forward_impl.1} parent=1 // pred_region
      %37 = dma.done [#allocation3], 64
    $region17: #{_forward_impl.1} parent=1 // pred_fallthru
      _
    // Predicated region
    $region18: #{_forward_impl.1} parent=1 // pred_check
      _
    $region19: #{_forward_impl.1} parent=1 // pred_check_branch
      %39 = sbr.rel (0) target = $region21
    $region20: #{_forward_impl.1} parent=1 // pred_region
      %40 = dma.done [#allocation6], 256
    $region21: #{_forward_impl.1} parent=1 // pred_fallthru
      _
    %v41 = vld [vmem:[#allocation2] sm:$0xf]
    %v42 = vld [vmem:[#allocation5] sm:$0xff]
    %v43 = vld [vmem:[#allocation5 + $0x8] sm:$0xff]
    %v44 = vld [vmem:[%s2] sm:$0x1]
    %v46 = vlaneseq
    %v47 = vshrl.u32 %v46, 7
    %v48 = vsub.s32 0, %v47
    %v49 = vrot.slane %v44, %v48
    %vm51 = vcmask 130048
    %v53 = vsel %vm51, %v41, 0
    %55 = vmatprep.subr.mxu0 0.0
    %56 = vmatpush1.msra.mxu0 %v42
    %57 = vmatprep.subr.mxu0 0.0
    %58 = vmatpush1.msra.mxu0 %v43
    %59 = vmatprep.subr.mxu0 0.0
    %60 = vmatpush1.msra.mxu0 0.0
    %61 = vmatprep.subr.mxu0 0.0
    %62 = vmatpush1.msra.mxu0 0.0
    %63 = vmatprep.subr.mxu0 0.0
    %64 = vmatpush1.msra.mxu0 0.0
    %65 = vmatprep.subr.mxu0 0.0
    %66 = vmatpush1.msra.mxu0 0.0
    %67 = vmatprep.subr.mxu0 0.0
    %68 = vmatpush1.msra.mxu0 0.0
    %69 = vmatprep.subr.mxu0 0.0
    %70 = vmatpush1.msra.mxu0 0.0
    %71 = vmatprep.subr.mxu0 0.0
    %72 = vmatpush1.msra.mxu0 0.0
    %73 = vmatprep.subr.mxu0 0.0
    %74 = vmatpush1.msra.mxu0 0.0
    %75 = vmatprep.subr.mxu0 0.0
    %76 = vmatpush1.msra.mxu0 0.0
    %77 = vmatprep.subr.mxu0 0.0
    %78 = vmatpush1.msra.mxu0 0.0
    %79 = vmatprep.subr.mxu0 0.0
    %80 = vmatpush1.msra.mxu0 0.0
    %81 = vmatprep.subr.mxu0 0.0
    %82 = vmatpush1.msra.mxu0 0.0
    %83 = vmatprep.subr.mxu0 0.0
    %84 = vmatpush1.msra.mxu0 0.0
    %85 = vmatprep.subr.mxu0 0.0
    %86 = vmatpush1.msra.mxu0 0.0
    %87 = vmatprep.subr.mxu0 0.0
    %88 = vmatpush1.msra.mxu0 0.0
    %89 = vmatprep.subr.mxu0 0.0
    %90 = vmatpush1.msra.mxu0 0.0
    %91 = vmatprep.subr.mxu0 0.0
    %92 = vmatpush1.msra.mxu0 0.0
    %93 = vmatprep.subr.mxu0 0.0
    %94 = vmatpush1.msra.mxu0 0.0
    %95 = vmatprep.subr.mxu0 0.0
    %96 = vmatpush1.msra.mxu0 0.0
    %97 = vmatprep.subr.mxu0 0.0
    %98 = vmatpush1.msra.mxu0 0.0
    %99 = vmatprep.subr.mxu0 0.0
    %100 = vmatpush1.msra.mxu0 0.0
    %101 = vmatprep.subr.mxu0 0.0
    %102 = vmatpush1.msra.mxu0 0.0
    %103 = vmatprep.subr.mxu0 0.0
    %104 = vmatpush1.msra.mxu0 0.0
    %105 = vmatprep.subr.mxu0 0.0
    %106 = vmatpush1.msra.mxu0 0.0
    %107 = vmatprep.subr.mxu0 0.0
    %108 = vmatpush1.msra.mxu0 0.0
    %109 = vmatprep.subr.mxu0 0.0
    %110 = vmatpush1.msra.mxu0 0.0
    %111 = vmatprep.subr.mxu0 0.0
    %112 = vmatpush1.msra.mxu0 0.0
    %113 = vmatprep.subr.mxu0 0.0
    %114 = vmatpush1.msra.mxu0 0.0
    %115 = vmatprep.subr.mxu0 0.0
    %116 = vmatpush1.msra.mxu0 0.0
    %117 = vmatprep.subr.mxu0 0.0
    %118 = vmatpush1.msra.mxu0 0.0
    %119 = vmatprep.mubr.f32.mxu0 0.0
    %120 = vmatmul.mubr.f32.gmra.mrb[0].mxu0 %v53
    %v121 = vpop.f32.mrb[0].mxu0
    %v122 = vadd.f32 %v49, %v121
    %v123 = vpop.f32.mrb[0].mxu0
    %124 = vdwg.mxu0
    %v125 = vtanh.pop %v122
    %vm126 = vcmask 257024
    %127 = vst.msk [vmem:[#allocation7] sm:$0xf] %vm126, %v125
    // Predicated region
    $region22: #{_forward_impl.1} parent=1 // pred_check
      _
    $region23: #{_forward_impl.1} parent=1 // pred_check_branch
      %129 = sbr.rel (0) target = $region25
    $region24: #{_forward_impl.1} parent=1 // pred_region
      %s131 = ssub.s32 64, 64
      %132 = vsyncadd [#allocation4], %s131
      %s134 = sshll.u32 [#allocation7], 4
      %s135 = int_to_ptr.vmem [resolvable:$true] %s134
      %137 = dma.vmem_to_hbm [thread:$0]  %s135, 64, %s3, [#allocation4]
    $region25: #{_forward_impl.1} parent=1 // pred_fallthru
      _
    // Predicated region
    $region26: #{_forward_impl.1} parent=1 // pred_check
      _
    $region27: #{_forward_impl.1} parent=1 // pred_check_branch
      %139 = sbr.rel (0) target = $region29
    $region28: #{_forward_impl.1} parent=1 // pred_region
      %140 = dma.done [#allocation4], 64
    $region29: #{_forward_impl.1} parent=1 // pred_fallthru
      _
    %141 = vsyncpa [#allocation3], 1
    %142 = vsyncpa [#allocation6], 1
    %143 = vsyncpa [#allocation4], 1

</llo_original>
